<compile_context>
chip_gen: v7x
topology: tpu7x:2x2x1
jax: 0.10.0
libtpu: 0.0.40
codegen_flags: <defaults>
</compile_context>

<pallas_src>
import functools
import math

import jax
import jax.numpy as jnp
from jax.experimental import pallas as pl
from jax.experimental.pallas import tpu as pltpu


def _learnable_sigmoid_kernel(x_ref, slope_ref, o_ref, *, beta):
    # x_ref: (ROW_TILE, LANE) tile; slope_ref: (1, LANE) resident row that
    # broadcasts over the sublane axis.  Pure VPU/EUP elementwise work.
    x = x_ref[...]
    s = slope_ref[...]
    y = jax.nn.sigmoid(s * x)
    if beta != 1.0:  # trace-time specialization: skip the vmul when beta == 1
        y = y * jnp.asarray(beta, dtype=y.dtype)
    o_ref[...] = y.astype(o_ref.dtype)


def _sublane_multiple(dtype):
    # Minimum legal sublane tiling per element width: f32 -> 8, bf16 -> 16,
    # int8/fp8 -> 32.
    return {4: 8, 2: 16, 1: 32}.get(jnp.dtype(dtype).itemsize, 8)


def _reference(x, slope, beta):
    return (beta * jax.nn.sigmoid(slope.astype(x.dtype) * x)).astype(x.dtype)


def learnable_sigmoid(x, slope, beta=1.0, *, min_kernel_elems=128 * 1024):
    """out = beta * sigmoid(slope * x), slope broadcast over the last dim of x."""
    in_features = x.shape[-1]
    assert slope.shape == (in_features,)

    orig_shape = x.shape
    dtype = x.dtype
    n = x.size
    itemsize = jnp.dtype(dtype).itemsize
    sublane = _sublane_multiple(dtype)

    # Tiny-input fallback: kernel launch + pipeline startup dominates for
    # small tensors; plain XLA is strictly faster there.
    if n < min_kernel_elems:
        return _reference(x, slope, beta)

    # LANE must be a multiple of in_features (so the slope pattern tiles
    # exactly) and of 128 (lane-dense stores / full-width DMA tiles).  Grow
    # toward ~1024 lanes when the LCM is small.
    lane = math.lcm(in_features, 128)
    if lane < 1024:
        lane *= 1024 // lane

    # Byte budget per block (~2 MiB): roofline curve is flat past this and it
    # keeps 2 in + 2 out pipelined buffers far under v7x's 64 MiB VMEM.
    block_budget = 2 * 1024 * 1024
    # Pathological in_features (huge LCM, e.g. large odd values): even a
    # minimum-height block would blow the VMEM budget -> fall back to XLA.
    if lane * sublane * itemsize > 4 * block_budget:
        return _reference(x, slope, beta)

    rows = pl.cdiv(n, lane)

    # Row tile from the byte budget, rounded down to the sublane multiple.
    row_tile = max(sublane, (block_budget // (lane * itemsize)) // sublane * sublane)
    # Guarantee >= 2 grid steps when there is enough work, so the "parallel"
    # grid axis can feed both TensorCores on v7x.
    if rows > sublane:
        half = ((pl.cdiv(rows, 2) + sublane - 1) // sublane) * sublane
        row_tile = min(row_tile, max(sublane, half))
    # Never exceed the (sublane-rounded) total row count.
    row_tile = min(row_tile, ((rows + sublane - 1) // sublane) * sublane)

    grid_rows = pl.cdiv(rows, row_tile)

    # ---- lane-dense repack ---------------------------------------------------
    n_repacked = rows * lane
    if n_repacked == n:
        # Fast path: free reshape, no pad / tail slice (no extra HBM passes).
        x2d = x.reshape(rows, lane)
    else:
        # Pad only up to the next LANE multiple (< LANE extra elements); the
        # last grid block is partial and Pallas masks the boundary.
        x2d = jnp.pad(x.reshape(-1), (0, n_repacked - n)).reshape(rows, lane)

    # Slope repeats every in_features elements; tiling it to LANE preserves
    # the exact broadcast pattern of the flattened input.
    slope_row = jnp.tile(slope.astype(dtype), lane // in_features).reshape(1, lane)

    # ---- pallas call -----------------------------------------------------------
    out2d = pl.pallas_call(
        functools.partial(_learnable_sigmoid_kernel, beta=float(beta)),
        out_shape=jax.ShapeDtypeStruct((rows, lane), dtype),
        grid_spec=pltpu.PrefetchScalarGridSpec(
            num_scalar_prefetch=0,
            grid=(grid_rows,),
            in_specs=[
                pl.BlockSpec((row_tile, lane), lambda i: (i, 0)),
                pl.BlockSpec((1, lane), lambda i: (0, 0)),  # resident slope row
            ],
            out_specs=pl.BlockSpec((row_tile, lane), lambda i: (i, 0)),
        ),
        compiler_params=pltpu.CompilerParams(
            dimension_semantics=("parallel",),        # free 2x on v7x (2 TCs)
            vmem_limit_bytes=32 * 1024 * 1024,
        ),
    )(x2d, slope_row)

    if n_repacked == n:
        return out2d.reshape(orig_shape)
    return out2d.reshape(-1)[:n].reshape(orig_shape)


if __name__ == "__main__":
    key = jax.random.PRNGKey(0)
    k1, k2 = jax.random.split(key)

    # ---- Case A: module-sized f32 input, beta=1, forced kernel path ----------
    batch, seq, in_features = 2, 8, 32
    beta = 1.0
    slope = jnp.ones((in_features,), dtype=jnp.float32)  # nn.Parameter(torch.ones)
    x = jax.random.normal(k1, (batch, seq, in_features), dtype=jnp.float32)

    out = learnable_sigmoid(x, slope, beta=beta, min_kernel_elems=0)
    out = jax.block_until_ready(out)
    ref = _reference(x, slope, beta)
    assert out.shape == x.shape
    assert jnp.max(jnp.abs(out - ref)) < 1e-5

    # ---- Case B: bf16, unaligned in_features, beta != 1 (padded path) --------
    in_features_b = 48
    beta_b = 2.0
    slope_b = jnp.ones((in_features_b,), dtype=jnp.float32)
    x_b = jax.random.normal(k2, (3, 5, in_features_b), dtype=jnp.bfloat16)

    out_b = learnable_sigmoid(x_b, slope_b, beta=beta_b, min_kernel_elems=0)
    out_b = jax.block_until_ready(out_b)
    ref_b = beta_b * jax.nn.sigmoid(slope_b * x_b.astype(jnp.float32))
    assert out_b.shape == x_b.shape
    assert jnp.max(jnp.abs(out_b.astype(jnp.float32) - ref_b)) < 2e-2

    # ---- Case C: default auto path (tiny input -> XLA fallback) --------------
    out_c = jax.block_until_ready(learnable_sigmoid(x, slope, beta=beta))
    assert jnp.max(jnp.abs(out_c - ref)) < 1e-5

    print("KERNEL_OK")
</pallas_src>

<mosaic_0001>
module attributes {stable_mosaic.version = 11 : i64} {
  func.func @_learnable_sigmoid_kernel(%arg0: i32, %arg1: memref<8x1024xf32, #tpu.memory_space<vmem>>, %arg2: memref<1x1024xf32, #tpu.memory_space<vmem>>, %arg3: memref<8x1024xf32, #tpu.memory_space<vmem>>) attributes {dimension_semantics = [#tpu.dimension_semantics<parallel>], iteration_bounds = array<i64: 1>, scalar_prefetch = 0 : i64, scratch_operands = 0 : i64, tpu.core_type = #tpu.core_type<tc>, window_params = [{transform_indices = @transform_0, window_bounds = array<i64: 8, 1024>}, {pipeline_mode = #tpu.pipeline_mode<synchronous>, transform_indices = @transform_1, window_bounds = array<i64: 1, 1024>}, {transform_indices = @transform_2, window_bounds = array<i64: 8, 1024>}]} {
    %c0 = arith.constant 0 : index
    %c0_0 = arith.constant 0 : index
    %0 = vector.load %arg1[%c0, %c0_0] : memref<8x1024xf32, #tpu.memory_space<vmem>>, vector<8x1024xf32>
    %c0_1 = arith.constant 0 : index
    %c0_2 = arith.constant 0 : index
    %1 = vector.load %arg2[%c0_1, %c0_2] : memref<1x1024xf32, #tpu.memory_space<vmem>>, vector<1x1024xf32>
    %2 = vector.broadcast %1 : vector<1x1024xf32> to vector<8x1024xf32>
    %3 = arith.mulf %2, %0 : vector<8x1024xf32>
    %4 = arith.negf %3 : vector<8x1024xf32>
    %5 = math.exp %4 : vector<8x1024xf32>
    %cst = arith.constant 1.000000e+00 : f32
    %6 = vector.broadcast %cst : f32 to vector<8x1024xf32>
    %7 = arith.addf %6, %5 : vector<8x1024xf32>
    %8 = arith.divf %6, %7 : vector<8x1024xf32>
    %c0_3 = arith.constant 0 : index
    %c0_4 = arith.constant 0 : index
    %9 = vector.load %arg3[%c0_3, %c0_4] : memref<8x1024xf32, #tpu.memory_space<vmem>>, vector<8x1024xf32>
    tpu.vector_store %arg3[%c0_3, %c0_4], %8 {strides = array<i32>} : memref<8x1024xf32, #tpu.memory_space<vmem>>, vector<8x1024xf32>,
    return
  }
  func.func @transform_0(%arg0: i32) -> (i32, i32) {
    %c0_i32 = arith.constant 0 : i32
    %c0_i32_0 = arith.constant 0 : i32
    return %arg0, %c0_i32 : i32, i32
  }
  func.func @transform_1(%arg0: i32) -> (i32, i32) {
    %c0_i32 = arith.constant 0 : i32
    %c0_i32_0 = arith.constant 0 : i32
    %c0_i32_1 = arith.constant 0 : i32
    return %c0_i32, %c0_i32_0 : i32, i32
  }
  func.func @transform_2(%arg0: i32) -> (i32, i32) {
    %c0_i32 = arith.constant 0 : i32
    %c0_i32_0 = arith.constant 0 : i32
    return %arg0, %c0_i32 : i32, i32
  }
}

</mosaic_0001>

<llo_original>
// kernel: tpu_custom_call.1
$region0: #{tpu_custom_call.1}
  #allocation0 [shape = 'u32[]', space=smem, size = 0x4, offset = 0x4, fixed_abs, tag = 'smem constant byte address 0x4 - core index']
  #allocation1 [shape = 'u32[144,128]{1,0:T(1,128)}', space=vmem, size = 0x12000, scoped, tag = 'internal scratch']
  %s0 = inlined_call_operand.hbm [shape: f32[1,1024], index: 0, kind: input, shape index: {}]
  %s1 = inlined_call_operand.hbm [shape: f32[1,1024], index: 1, kind: input, shape index: {}]
  %s2 = inlined_call_operand.hbm [shape: f32[1,1024], index: 2, kind: output, shape index: {}]
  %s3 = sld [smem:[#allocation0]]
  $region26: #{tpu_custom_call.1} parent=0
    _
  %s5 = ssub.s32 1, %s3
  %s6 = scalar_select 0, %s5, %s3
  $region1: #{tpu_custom_call.1} parent=0
    #allocation2 [shape = 'u8[32768]{0}', space=vmem, size = 0x8000, scoped, tag = 'input window, operand 0, single buffered']
    #allocation3 [shape = 's32[1]{0}', space=sflag, size = 0x4, scoped, tag = 'scoped memory for tpu_custom_call.1']
    #allocation4 [shape = 's32[1]{0}', space=sflag, size = 0x4, scoped, tag = 'scoped memory for tpu_custom_call.1']
    #allocation5 [shape = 'u8[4096]{0}', space=vmem, size = 0x1000, scoped, tag = 'input window, operand 1, single buffered']
    #allocation6 [shape = 's32[1]{0}', space=sflag, size = 0x4, scoped, tag = 'scoped memory for tpu_custom_call.1']
    #allocation7 [shape = 'u8[32768]{0}', space=vmem, size = 0x8000, scoped, tag = 'output window, operand 0, single buffered']
    %7 = vsyncpa [#allocation3], 0
    %8 = vsyncpa [#allocation6], 0
    %9 = vsyncpa [#allocation4], 0
    // Predicated region
    $region2: #{tpu_custom_call.1} parent=1 // pred_check
      _
    $region3: #{tpu_custom_call.1} parent=1 // pred_check_branch
      %11 = sbr.rel (0) target = $region5
    $region4: #{tpu_custom_call.1} parent=1 // pred_region
      %s13 = ssub.s32 1024, 128
      %14 = vsyncadd [#allocation3], %s13
      %s15 = sshll.u32 [#allocation2], 4
      %s16 = int_to_ptr.vmem [resolvable:$true] %s15
      %21 = dma.hbm_to_vmem [thread:$0]  %s0, 128, %s16, [#allocation3], 128, 128, 8
    $region5: #{tpu_custom_call.1} parent=1 // pred_fallthru
      _
    // Predicated region
    $region6: #{tpu_custom_call.1} parent=1 // pred_check
      _
    $region7: #{tpu_custom_call.1} parent=1 // pred_check_branch
      %23 = sbr.rel (0) target = $region9
    $region8: #{tpu_custom_call.1} parent=1 // pred_region
      %s25 = ssub.s32 128, 128
      %26 = vsyncadd [#allocation6], %s25
      %s28 = sshll.u32 [#allocation5], 4
      %s29 = int_to_ptr.vmem [resolvable:$true] %s28
      %31 = dma.hbm_to_vmem [thread:$0]  %s1, 128, %s29, [#allocation6]
    $region9: #{tpu_custom_call.1} parent=1 // pred_fallthru
      _
    // Predicated region
    $region10: #{tpu_custom_call.1} parent=1 // pred_check
      _
    $region11: #{tpu_custom_call.1} parent=1 // pred_check_branch
      %33 = sbr.rel (0) target = $region13
    $region12: #{tpu_custom_call.1} parent=1 // pred_region
      %34 = dma.done [#allocation3], 1024
    $region13: #{tpu_custom_call.1} parent=1 // pred_fallthru
      _
    // Predicated region
    $region14: #{tpu_custom_call.1} parent=1 // pred_check
      _
    $region15: #{tpu_custom_call.1} parent=1 // pred_check_branch
      %36 = sbr.rel (0) target = $region17
    $region16: #{tpu_custom_call.1} parent=1 // pred_region
      %37 = dma.done [#allocation6], 128
    $region17: #{tpu_custom_call.1} parent=1 // pred_fallthru
      _
    %v38 = vld [vmem:[#allocation2] sm:$0xff]
    %v39 = vld [vmem:[#allocation2 + $0x8] sm:$0xff]
    %v40 = vld [vmem:[#allocation2 + $0x10] sm:$0xff]
    %v41 = vld [vmem:[#allocation2 + $0x18] sm:$0xff]
    %v42 = vld [vmem:[#allocation2 + $0x20] sm:$0xff]
    %v43 = vld [vmem:[#allocation2 + $0x28] sm:$0xff]
    %v44 = vld [vmem:[#allocation2 + $0x30] sm:$0xff]
    %v45 = vld [vmem:[#allocation2 + $0x38] sm:$0xff]
    %v46 = vld [vmem:[#allocation5] sm:$0xff]
    %v48 = vlaneseq
    %v49 = vshrl.u32 %v48, 7
    %v50 = vsub.s32 0, %v49
    %v51 = vrot.slane %v46, %v50
    %v52 = vlaneseq
    %v53 = vshrl.u32 %v52, 7
    %v54 = vsub.s32 1, %v53
    %v55 = vrot.slane %v46, %v54
    %v56 = vlaneseq
    %v57 = vshrl.u32 %v56, 7
    %v58 = vsub.s32 2, %v57
    %v59 = vrot.slane %v46, %v58
    %v60 = vlaneseq
    %v61 = vshrl.u32 %v60, 7
    %v62 = vsub.s32 3, %v61
    %v63 = vrot.slane %v46, %v62
    %v64 = vlaneseq
    %v65 = vshrl.u32 %v64, 7
    %v66 = vsub.s32 4, %v65
    %v67 = vrot.slane %v46, %v66
    %v68 = vlaneseq
    %v69 = vshrl.u32 %v68, 7
    %v70 = vsub.s32 5, %v69
    %v71 = vrot.slane %v46, %v70
    %v72 = vlaneseq
    %v73 = vshrl.u32 %v72, 7
    %v74 = vsub.s32 6, %v73
    %v75 = vrot.slane %v46, %v74
    %v76 = vlaneseq
    %v77 = vshrl.u32 %v76, 7
    %v78 = vsub.s32 7, %v77
    %v79 = vrot.slane %v46, %v78
    %v96 = vcombine.low %v38, %v39
    %v97 = vcombine.high %v38, %v39
    %v98 = vcombine.low %v40, %v41
    %v99 = vcombine.high %v40, %v41
    %v100 = vcombine.low %v42, %v43
    %v101 = vcombine.high %v42, %v43
    %v102 = vcombine.low %v44, %v45
    %v103 = vcombine.high %v44, %v45
    %v105 = vunpack.c.l.s4 1966171168
    %v106 = vunpack.c.0.s8 %v105
    %v107 = vlaneseq
    %v108 = vshrl.u32 %v107, 7
    %v109 = vsub.s32 %v106, %v108
    %v110 = vrot.slane %v96, %v109
    %v112 = vunpack.c.l.s4 1966171168
    %v113 = vunpack.c.0.s8 %v112
    %v114 = vlaneseq
    %v115 = vshrl.u32 %v114, 7
    %v116 = vsub.s32 %v113, %v115
    %v117 = vrot.slane %v97, %v116
    %v119 = vunpack.c.l.s4 1966171168
    %v120 = vunpack.c.0.s8 %v119
    %v121 = vlaneseq
    %v122 = vshrl.u32 %v121, 7
    %v123 = vsub.s32 %v120, %v122
    %v124 = vrot.slane %v98, %v123
    %v126 = vunpack.c.l.s4 1966171168
    %v127 = vunpack.c.0.s8 %v126
    %v128 = vlaneseq
    %v129 = vshrl.u32 %v128, 7
    %v130 = vsub.s32 %v127, %v129
    %v131 = vrot.slane %v99, %v130
    %v133 = vunpack.c.l.s4 1966171168
    %v134 = vunpack.c.0.s8 %v133
    %v135 = vlaneseq
    %v136 = vshrl.u32 %v135, 7
    %v137 = vsub.s32 %v134, %v136
    %v138 = vrot.slane %v100, %v137
    %v140 = vunpack.c.l.s4 1966171168
    %v141 = vunpack.c.0.s8 %v140
    %v142 = vlaneseq
    %v143 = vshrl.u32 %v142, 7
    %v144 = vsub.s32 %v141, %v143
    %v145 = vrot.slane %v101, %v144
    %v147 = vunpack.c.l.s4 1966171168
    %v148 = vunpack.c.0.s8 %v147
    %v149 = vlaneseq
    %v150 = vshrl.u32 %v149, 7
    %v151 = vsub.s32 %v148, %v150
    %v152 = vrot.slane %v102, %v151
    %v154 = vunpack.c.l.s4 1966171168
    %v155 = vunpack.c.0.s8 %v154
    %v156 = vlaneseq
    %v157 = vshrl.u32 %v156, 7
    %v158 = vsub.s32 %v155, %v157
    %v159 = vrot.slane %v103, %v158
    %v160 = vcombine.low %v110, %v124
    %v161 = vcombine.high %v110, %v124
    %v162 = vcombine.low %v117, %v131
    %v163 = vcombine.high %v117, %v131
    %v164 = vcombine.low %v138, %v152
    %v165 = vcombine.high %v138, %v152
    %v166 = vcombine.low %v145, %v159
    %v167 = vcombine.high %v145, %v159
    %v169 = vunpack.c.l.s4 1966171168
    %v170 = vunpack.c.0.s8 %v169
    %v171 = vlaneseq
    %v172 = vshrl.u32 %v171, 7
    %v173 = vsub.s32 %v170, %v172
    %v174 = vrot.slane %v160, %v173
    %v176 = vunpack.c.l.s4 1966171168
    %v177 = vunpack.c.0.s8 %v176
    %v178 = vlaneseq
    %v179 = vshrl.u32 %v178, 7
    %v180 = vsub.s32 %v177, %v179
    %v181 = vrot.slane %v162, %v180
    %v183 = vunpack.c.l.s4 1966171168
    %v184 = vunpack.c.0.s8 %v183
    %v185 = vlaneseq
    %v186 = vshrl.u32 %v185, 7
    %v187 = vsub.s32 %v184, %v186
    %v188 = vrot.slane %v161, %v187
    %v190 = vunpack.c.l.s4 1966171168
    %v191 = vunpack.c.0.s8 %v190
    %v192 = vlaneseq
    %v193 = vshrl.u32 %v192, 7
    %v194 = vsub.s32 %v191, %v193
    %v195 = vrot.slane %v163, %v194
    %v197 = vunpack.c.l.s4 1966171168
    %v198 = vunpack.c.0.s8 %v197
    %v199 = vlaneseq
    %v200 = vshrl.u32 %v199, 7
    %v201 = vsub.s32 %v198, %v200
    %v202 = vrot.slane %v164, %v201
    %v204 = vunpack.c.l.s4 1966171168
    %v205 = vunpack.c.0.s8 %v204
    %v206 = vlaneseq
    %v207 = vshrl.u32 %v206, 7
    %v208 = vsub.s32 %v205, %v207
    %v209 = vrot.slane %v166, %v208
    %v211 = vunpack.c.l.s4 1966171168
    %v212 = vunpack.c.0.s8 %v211
    %v213 = vlaneseq
    %v214 = vshrl.u32 %v213, 7
    %v215 = vsub.s32 %v212, %v214
    %v216 = vrot.slane %v165, %v215
    %v218 = vunpack.c.l.s4 1966171168
    %v219 = vunpack.c.0.s8 %v218
    %v220 = vlaneseq
    %v221 = vshrl.u32 %v220, 7
    %v222 = vsub.s32 %v219, %v221
    %v223 = vrot.slane %v167, %v222
    %v224 = vcombine.low %v174, %v202
    %v225 = vcombine.high %v174, %v202
    %v226 = vcombine.low %v181, %v209
    %v227 = vcombine.high %v181, %v209
    %v228 = vcombine.low %v188, %v216
    %v229 = vcombine.high %v188, %v216
    %v230 = vcombine.low %v195, %v223
    %v231 = vcombine.high %v195, %v223
    %v240 = vmul.f32 %v51, %v224
    %v241 = vmul.f32 %v55, %v228
    %v242 = vmul.f32 %v59, %v225
    %v243 = vmul.f32 %v63, %v229
    %v244 = vmul.f32 %v67, %v226
    %v245 = vmul.f32 %v71, %v230
    %v246 = vmul.f32 %v75, %v227
    %v247 = vmul.f32 %v79, %v231
    %v248 = vxor.u32 %v240, 2147483648
    %v249 = vxor.u32 %v241, 2147483648
    %v250 = vxor.u32 %v242, 2147483648
    %v251 = vxor.u32 %v243, 2147483648
    %v252 = vxor.u32 %v244, 2147483648
    %v253 = vxor.u32 %v245, 2147483648
    %v254 = vxor.u32 %v246, 2147483648
    %v255 = vxor.u32 %v247, 2147483648
    %v256 = vmul.f32 %v248, 1.442695
    %v257 = vpow.pop %v256
    %v258 = vmul.f32 %v249, 1.442695
    %v259 = vpow.pop %v258
    %v260 = vmul.f32 %v250, 1.442695
    %v261 = vpow.pop %v260
    %v262 = vmul.f32 %v251, 1.442695
    %v263 = vpow.pop %v262
    %v264 = vmul.f32 %v252, 1.442695
    %v265 = vpow.pop %v264
    %v266 = vmul.f32 %v253, 1.442695
    %v267 = vpow.pop %v266
    %v268 = vmul.f32 %v254, 1.442695
    %v269 = vpow.pop %v268
    %v270 = vmul.f32 %v255, 1.442695
    %v271 = vpow.pop %v270
    %v272 = vadd.f32 %v257, 1.0
    %v273 = vadd.f32 %v259, 1.0
    %v274 = vadd.f32 %v261, 1.0
    %v275 = vadd.f32 %v263, 1.0
    %v276 = vadd.f32 %v265, 1.0
    %v277 = vadd.f32 %v267, 1.0
    %v278 = vadd.f32 %v269, 1.0
    %v279 = vadd.f32 %v271, 1.0
    %v280 = vrcp.pop %v272
    %v281 = vmul.f32 1.0, %v280
    %v282 = vrcp.pop %v273
    %v283 = vmul.f32 1.0, %v282
    %v284 = vrcp.pop %v274
    %v285 = vmul.f32 1.0, %v284
    %v286 = vrcp.pop %v275
    %v287 = vmul.f32 1.0, %v286
    %v288 = vrcp.pop %v276
    %v289 = vmul.f32 1.0, %v288
    %v290 = vrcp.pop %v277
    %v291 = vmul.f32 1.0, %v290
    %v292 = vrcp.pop %v278
    %v293 = vmul.f32 1.0, %v292
    %v294 = vrcp.pop %v279
    %v295 = vmul.f32 1.0, %v294
    %v304 = vcombine.low %v281, %v283
    %v305 = vcombine.high %v281, %v283
    %v306 = vcombine.low %v285, %v287
    %v307 = vcombine.high %v285, %v287
    %v308 = vcombine.low %v289, %v291
    %v309 = vcombine.high %v289, %v291
    %v310 = vcombine.low %v293, %v295
    %v311 = vcombine.high %v293, %v295
    %v313 = vunpack.c.l.s4 1966171168
    %v314 = vunpack.c.0.s8 %v313
    %v315 = vlaneseq
    %v316 = vshrl.u32 %v315, 7
    %v317 = vsub.s32 %v314, %v316
    %v318 = vrot.slane %v304, %v317
    %v320 = vunpack.c.l.s4 1966171168
    %v321 = vunpack.c.0.s8 %v320
    %v322 = vlaneseq
    %v323 = vshrl.u32 %v322, 7
    %v324 = vsub.s32 %v321, %v323
    %v325 = vrot.slane %v305, %v324
    %v327 = vunpack.c.l.s4 1966171168
    %v328 = vunpack.c.0.s8 %v327
    %v329 = vlaneseq
    %v330 = vshrl.u32 %v329, 7
    %v331 = vsub.s32 %v328, %v330
    %v332 = vrot.slane %v306, %v331
    %v334 = vunpack.c.l.s4 1966171168
    %v335 = vunpack.c.0.s8 %v334
    %v336 = vlaneseq
    %v337 = vshrl.u32 %v336, 7
    %v338 = vsub.s32 %v335, %v337
    %v339 = vrot.slane %v307, %v338
    %v341 = vunpack.c.l.s4 1966171168
    %v342 = vunpack.c.0.s8 %v341
    %v343 = vlaneseq
    %v344 = vshrl.u32 %v343, 7
    %v345 = vsub.s32 %v342, %v344
    %v346 = vrot.slane %v308, %v345
    %v348 = vunpack.c.l.s4 1966171168
    %v349 = vunpack.c.0.s8 %v348
    %v350 = vlaneseq
    %v351 = vshrl.u32 %v350, 7
    %v352 = vsub.s32 %v349, %v351
    %v353 = vrot.slane %v309, %v352
    %v355 = vunpack.c.l.s4 1966171168
    %v356 = vunpack.c.0.s8 %v355
    %v357 = vlaneseq
    %v358 = vshrl.u32 %v357, 7
    %v359 = vsub.s32 %v356, %v358
    %v360 = vrot.slane %v310, %v359
    %v362 = vunpack.c.l.s4 1966171168
    %v363 = vunpack.c.0.s8 %v362
    %v364 = vlaneseq
    %v365 = vshrl.u32 %v364, 7
    %v366 = vsub.s32 %v363, %v365
    %v367 = vrot.slane %v311, %v366
    %v368 = vcombine.low %v318, %v332
    %v369 = vcombine.high %v318, %v332
    %v370 = vcombine.low %v325, %v339
    %v371 = vcombine.high %v325, %v339
    %v372 = vcombine.low %v346, %v360
    %v373 = vcombine.high %v346, %v360
    %v374 = vcombine.low %v353, %v367
    %v375 = vcombine.high %v353, %v367
    %v377 = vunpack.c.l.s4 1966171168
    %v378 = vunpack.c.0.s8 %v377
    %v379 = vlaneseq
    %v380 = vshrl.u32 %v379, 7
    %v381 = vsub.s32 %v378, %v380
    %v382 = vrot.slane %v368, %v381
    %v384 = vunpack.c.l.s4 1966171168
    %v385 = vunpack.c.0.s8 %v384
    %v386 = vlaneseq
    %v387 = vshrl.u32 %v386, 7
    %v388 = vsub.s32 %v385, %v387
    %v389 = vrot.slane %v370, %v388
    %v391 = vunpack.c.l.s4 1966171168
    %v392 = vunpack.c.0.s8 %v391
    %v393 = vlaneseq
    %v394 = vshrl.u32 %v393, 7
    %v395 = vsub.s32 %v392, %v394
    %v396 = vrot.slane %v369, %v395
    %v398 = vunpack.c.l.s4 1966171168
    %v399 = vunpack.c.0.s8 %v398
    %v400 = vlaneseq
    %v401 = vshrl.u32 %v400, 7
    %v402 = vsub.s32 %v399, %v401
    %v403 = vrot.slane %v371, %v402
    %v405 = vunpack.c.l.s4 1966171168
    %v406 = vunpack.c.0.s8 %v405
    %v407 = vlaneseq
    %v408 = vshrl.u32 %v407, 7
    %v409 = vsub.s32 %v406, %v408
    %v410 = vrot.slane %v372, %v409
    %v412 = vunpack.c.l.s4 1966171168
    %v413 = vunpack.c.0.s8 %v412
    %v414 = vlaneseq
    %v415 = vshrl.u32 %v414, 7
    %v416 = vsub.s32 %v413, %v415
    %v417 = vrot.slane %v374, %v416
    %v419 = vunpack.c.l.s4 1966171168
    %v420 = vunpack.c.0.s8 %v419
    %v421 = vlaneseq
    %v422 = vshrl.u32 %v421, 7
    %v423 = vsub.s32 %v420, %v422
    %v424 = vrot.slane %v373, %v423
    %v426 = vunpack.c.l.s4 1966171168
    %v427 = vunpack.c.0.s8 %v426
    %v428 = vlaneseq
    %v429 = vshrl.u32 %v428, 7
    %v430 = vsub.s32 %v427, %v429
    %v431 = vrot.slane %v375, %v430
    %v432 = vcombine.low %v382, %v410
    %v433 = vcombine.high %v382, %v410
    %v434 = vcombine.low %v389, %v417
    %v435 = vcombine.high %v389, %v417
    %v436 = vcombine.low %v396, %v424
    %v437 = vcombine.high %v396, %v424
    %v438 = vcombine.low %v403, %v431
    %v439 = vcombine.high %v403, %v431
    %448 = vst [vmem:[#allocation7] sm:$0xff] %v432
    %449 = vst [vmem:[#allocation7 + $0x8] sm:$0xff] %v436
    %450 = vst [vmem:[#allocation7 + $0x10] sm:$0xff] %v433
    %451 = vst [vmem:[#allocation7 + $0x18] sm:$0xff] %v437
    %452 = vst [vmem:[#allocation7 + $0x20] sm:$0xff] %v434
    %453 = vst [vmem:[#allocation7 + $0x28] sm:$0xff] %v438
    %454 = vst [vmem:[#allocation7 + $0x30] sm:$0xff] %v435
    %455 = vst [vmem:[#allocation7 + $0x38] sm:$0xff] %v439
    // Predicated region
    $region18: #{tpu_custom_call.1} parent=1 // pred_check
      _
    $region19: #{tpu_custom_call.1} parent=1 // pred_check_branch
      %457 = sbr.rel (0) target = $region21
    $region20: #{tpu_custom_call.1} parent=1 // pred_region
      %s459 = ssub.s32 1024, 128
      %460 = vsyncadd [#allocation4], %s459
      %s461 = sshll.u32 [#allocation7], 4
      %s462 = int_to_ptr.vmem [resolvable:$true] %s461
      %467 = dma.vmem_to_hbm [thread:$0]  %s462, 128, %s2, [#allocation4], 128, 128, 8
    $region21: #{tpu_custom_call.1} parent=1 // pred_fallthru
      _
    // Predicated region
    $region22: #{tpu_custom_call.1} parent=1 // pred_check
      _
    $region23: #{tpu_custom_call.1} parent=1 // pred_check_branch
      %469 = sbr.rel (0) target = $region25
    $region24: #{tpu_custom_call.1} parent=1 // pred_region
      %470 = dma.done [#allocation4], 1024
    $region25: #{tpu_custom_call.1} parent=1 // pred_fallthru
      _
    %471 = vsyncpa [#allocation3], 1
    %472 = vsyncpa [#allocation6], 1
    %473 = vsyncpa [#allocation4], 1

</llo_original>
